<compile_context>
chip_gen: v7x
topology: tpu7x:2x2x1
jax: 0.10.0
libtpu: 0.0.40
codegen_flags: <defaults>
</compile_context>

<pallas_src>
import math
import jax
import jax.numpy as jnp
from jax.experimental import pallas as pl
from jax.experimental.pallas import tpu as pltpu

INPUT_SIZE = 3
OUTPUT_SIZE = 1
HIDDEN_SIZE = 32   # accepted by the module's __init__ but unused by forward

LANES = 128        # batch rows mapped onto the 128-lane axis
MAX_ROWS_PER_TILE = 2048   # rows of the (G, 384) array per tile -> 3 MiB useful input/tile


def _round_up(x, m):
    return (x + m - 1) // m * m


def _linear_kernel(x_ref, s_ref, b_ref, o_ref):
    # x_ref: (R, 3*128)  s_ref: (3*128, 128)  b_ref: (1, 1) f32 in SMEM  o_ref: (R, 128)
    # Single MXU pass per tile, f32 accumulation, lane-dense input and output.
    acc = jnp.dot(x_ref[...], s_ref[...], preferred_element_type=jnp.float32)
    o_ref[...] = (acc + b_ref[0, 0]).astype(o_ref.dtype)


def linear_forward(x, weight, bias, *, max_rows_per_tile=MAX_ROWS_PER_TILE):
    """nn.Linear forward: out = x @ weight.T + bias.

    x: (B, in_features) ; weight: (out_features, in_features) ; bias: (out_features,)
    """
    B, K = x.shape
    N, K_w = weight.shape
    assert K == K_w
    # TODO(synk): kernel is specialized for OUTPUT_SIZE == 1; larger N would tile N as well.
    assert N == 1

    dt = x.dtype  # keep the caller's activation dtype on the HBM read path (no f32 upcast pass)

    # --- lane-dense reformulation (wrapper side, reshape is free; pad only when needed) ---
    Bp = _round_up(max(B, 1), LANES)
    if Bp != B:
        x = jnp.pad(x, ((0, Bp - B), (0, 0)))
    G = Bp // LANES
    x_flat = x.reshape(G, K * LANES)          # row-major: x_flat[g, 3*j + k] == x[g*128 + j, k]

    # Selection-weight matrix: S[3*j + k, j] = W[0, k]  ->  (x_flat @ S)[g, j] = x[g*128+j, :] @ W[0, :]
    w_flat = weight.reshape(-1).astype(dt)                                    # (3,)
    S = (jnp.eye(LANES, dtype=dt)[:, None, :] * w_flat[None, :, None]).reshape(K * LANES, LANES)
    b = bias.astype(jnp.float32).reshape(1, 1)                                # scalar, lives in SMEM

    # Row-tile of the (G, 384) array: multiple of 8 sublanes (or the full extent when small).
    if G <= max_rows_per_tile:
        R = G
    else:
        R = max(8, (max_rows_per_tile // 8) * 8)
    grid = (pl.cdiv(G, R),)

    itemsize = jnp.dtype(dt).itemsize
    cost = pl.CostEstimate(
        flops=2 * B * K,
        transcendentals=0,
        bytes_accessed=G * K * LANES * itemsize      # x stream
        + G * LANES * itemsize                       # output stream
        + K * LANES * LANES * itemsize               # resident S
        + 4,                                         # bias
    )

    out_flat = pl.pallas_call(
        _linear_kernel,
        out_shape=jax.ShapeDtypeStruct((G, LANES), dt),
        grid_spec=pltpu.PrefetchScalarGridSpec(
            num_scalar_prefetch=0,
            grid=grid,
            in_specs=[
                # x streams through in (R, 384) lane-dense tiles.
                pl.BlockSpec((R, K * LANES), lambda i: (i, 0)),
                # S: constant index_map -> resident in VMEM across all batch tiles.
                pl.BlockSpec((K * LANES, LANES), lambda i: (0, 0)),
                # bias: scalar in SMEM.
                pl.BlockSpec(memory_space=pltpu.MemorySpace.SMEM),
            ],
            out_specs=pl.BlockSpec((R, LANES), lambda i: (i, 0)),
        ),
        compiler_params=pltpu.CompilerParams(
            # Batch tiles are independent -> shard the grid across TensorCores (v7x megacore).
            dimension_semantics=("parallel",),
        ),
        cost_estimate=cost,
    )(x_flat, S, b)

    # (G, 128) -> (Bp, 1) is free (row-major); drop the padded tail rows.
    return out_flat.reshape(Bp, 1)[:B]


def init_linear_params(key, in_features, out_features):
    # Deterministic init mimicking nn.Linear: U(-1/sqrt(fan_in), 1/sqrt(fan_in)).
    kw, kb = jax.random.split(key)
    bound = 1.0 / math.sqrt(in_features)
    weight = jax.random.uniform(kw, (out_features, in_features), jnp.float32, -bound, bound)
    bias = jax.random.uniform(kb, (out_features,), jnp.float32, -bound, bound)
    return weight, bias


if __name__ == "__main__":
    key = jax.random.PRNGKey(0)
    k_x, k_p, k_x2 = jax.random.split(key, 3)

    weight, bias = init_linear_params(k_p, INPUT_SIZE, OUTPUT_SIZE)

    # Small batch (single tile, B < 128 -> padded + single-row block).
    batch = 8
    x = jax.random.normal(k_x, (batch, INPUT_SIZE), jnp.float32)
    out = jax.block_until_ready(linear_forward(x, weight, bias))
    ref = x @ weight.T + bias
    assert out.shape == (batch, OUTPUT_SIZE)
    assert jnp.allclose(out, ref, atol=1e-5, rtol=1e-5)

    # Ragged batch with a small tile cap: exercises row padding (B % 128 != 0),
    # multiple grid steps and a partial last tile of the (G, 384) array.
    batch2 = 17 * LANES - 50
    x2 = jax.random.normal(k_x2, (batch2, INPUT_SIZE), jnp.float32)
    out2 = jax.block_until_ready(linear_forward(x2, weight, bias, max_rows_per_tile=8))
    ref2 = x2 @ weight.T + bias
    assert out2.shape == (batch2, OUTPUT_SIZE)
    assert jnp.allclose(out2, ref2, atol=1e-5, rtol=1e-5)

    print("KERNEL_OK")
</pallas_src>

<mosaic_0001>
module attributes {stable_mosaic.version = 11 : i64} {
  func.func @_linear_kernel(%arg0: i32, %arg1: memref<1x384xf32, #tpu.memory_space<vmem>>, %arg2: memref<384x128xf32, #tpu.memory_space<vmem>>, %arg3: memref<1x1xf32, #tpu.memory_space<smem>>, %arg4: memref<1x128xf32, #tpu.memory_space<vmem>>) attributes {dimension_semantics = [#tpu.dimension_semantics<parallel>], iteration_bounds = array<i64: 1>, scalar_prefetch = 0 : i64, scratch_operands = 0 : i64, tpu.core_type = #tpu.core_type<tc>, window_params = [{transform_indices = @transform_0, window_bounds = array<i64: 1, 384>}, {pipeline_mode = #tpu.pipeline_mode<synchronous>, transform_indices = @transform_1, window_bounds = array<i64: 384, 128>}, {transform_indices = @transform_2, window_bounds = array<i64: 1, 1>}, {transform_indices = @transform_3, window_bounds = array<i64: 1, 128>}]} {
    %c0 = arith.constant 0 : index
    %c0_0 = arith.constant 0 : index
    %0 = vector.load %arg1[%c0, %c0_0] : memref<1x384xf32, #tpu.memory_space<vmem>>, vector<1x384xf32>
    %c0_1 = arith.constant 0 : index
    %c0_2 = arith.constant 0 : index
    %1 = vector.load %arg2[%c0_1, %c0_2] : memref<384x128xf32, #tpu.memory_space<vmem>>, vector<384x128xf32>
    %cst = arith.constant dense<0.000000e+00> : vector<1x128xf32>
    %2 = tpu.matmul %0, %1, %cst {dimension_numbers = #tpu.dot_dimension_numbers<[1], [0], [0], [1], [0, 0, 1, 1], [], []>} : vector<1x384xf32>, vector<384x128xf32>, vector<1x128xf32> -> vector<1x128xf32>
    %c0_3 = arith.constant 0 : index
    %c0_4 = arith.constant 0 : index
    %3 = memref.load %arg3[%c0_3, %c0_4] : memref<1x1xf32, #tpu.memory_space<smem>>
    %4 = vector.broadcast %3 : f32 to vector<1x128xf32>
    %5 = arith.addf %2, %4 : vector<1x128xf32>
    %c0_5 = arith.constant 0 : index
    %c0_6 = arith.constant 0 : index
    %6 = vector.load %arg4[%c0_5, %c0_6] : memref<1x128xf32, #tpu.memory_space<vmem>>, vector<1x128xf32>
    tpu.vector_store %arg4[%c0_5, %c0_6], %5 {strides = array<i32>} : memref<1x128xf32, #tpu.memory_space<vmem>>, vector<1x128xf32>,
    return
  }
  func.func @transform_0(%arg0: i32) -> (i32, i32) {
    %c0_i32 = arith.constant 0 : i32
    %c0_i32_0 = arith.constant 0 : i32
    return %arg0, %c0_i32 : i32, i32
  }
  func.func @transform_1(%arg0: i32) -> (i32, i32) {
    %c0_i32 = arith.constant 0 : i32
    %c0_i32_0 = arith.constant 0 : i32
    %c0_i32_1 = arith.constant 0 : i32
    return %c0_i32, %c0_i32_0 : i32, i32
  }
  func.func @transform_2(%arg0: i32) -> (i32, i32) {
    %c0_i32 = arith.constant 0 : i32
    %c0_i32_0 = arith.constant 0 : i32
    %c0_i32_1 = arith.constant 0 : i32
    return %c0_i32, %c0_i32_0 : i32, i32
  }
  func.func @transform_3(%arg0: i32) -> (i32, i32) {
    %c0_i32 = arith.constant 0 : i32
    %c0_i32_0 = arith.constant 0 : i32
    return %arg0, %c0_i32 : i32, i32
  }
}

</mosaic_0001>

<llo_original>
// kernel: tpu_custom_call.1
$region0: #{tpu_custom_call.1}
  #allocation0 [shape = 'u32[]', space=smem, size = 0x4, offset = 0x4, fixed_abs, tag = 'smem constant byte address 0x4 - core index']
  #allocation1 [shape = 'u32[144,128]{1,0:T(1,128)}', space=vmem, size = 0x12000, scoped, tag = 'internal scratch']
  #allocation2 [shape = 'f32[1,1]{1,0:T(1,128)S(6)}', space=smem, size = 0x200, scoped, tag = 'scoped memory for tpu_custom_call.1']
  %s0 = inlined_call_operand.vmem [shape: f32[1,384], index: 0, kind: input, shape index: {}]
  %s1 = inlined_call_operand.hbm [shape: f32[384,128], index: 1, kind: input, shape index: {}]
  %s2 = inlined_call_operand.<no memory space> [shape: f32[1,1], index: 2, kind: input, shape index: {}]
  %s3 = inlined_call_operand.hbm [shape: f32[1,128], index: 3, kind: output, shape index: {}]
  %s4 = sld [smem:[#allocation0]]
  $region26: #{tpu_custom_call.1} parent=0
    _
  %s6 = ssub.s32 1, %s4
  %s7 = scalar_select 0, %s6, %s4
  %8 = sst [smem:[#allocation2]] %s2
  $region1: #{tpu_custom_call.1} parent=0
    #allocation3 [shape = 'u8[196608]{0}', space=vmem, size = 0x30000, scoped, tag = 'input window, operand 1, single buffered']
    #allocation4 [shape = 's32[1]{0}', space=sflag, size = 0x4, scoped, tag = 'scoped memory for tpu_custom_call.1']
    #allocation5 [shape = 's32[1]{0}', space=sflag, size = 0x4, scoped, tag = 'scoped memory for tpu_custom_call.1']
    #allocation6 [shape = 'u8[512]{0}', space=vmem, size = 0x400, scoped, tag = 'output window, operand 0, single buffered']
    %9 = vsyncpa [#allocation4], 0
    %10 = vsyncpa [#allocation5], 0
    // Predicated region
    $region2: #{tpu_custom_call.1} parent=1 // pred_check
      _
    $region3: #{tpu_custom_call.1} parent=1 // pred_check_branch
      %12 = sbr.rel (0) target = $region5
    $region4: #{tpu_custom_call.1} parent=1 // pred_region
      _
    $region5: #{tpu_custom_call.1} parent=1 // pred_fallthru
      _
    // Predicated region
    $region6: #{tpu_custom_call.1} parent=1 // pred_check
      _
    $region7: #{tpu_custom_call.1} parent=1 // pred_check_branch
      %14 = sbr.rel (0) target = $region9
    $region8: #{tpu_custom_call.1} parent=1 // pred_region
      %s16 = ssub.s32 6144, 6144
      %17 = vsyncadd [#allocation4], %s16
      %s18 = sshll.u32 [#allocation3], 4
      %s19 = int_to_ptr.vmem [resolvable:$true] %s18
      %24 = dma.hbm_to_vmem [thread:$0]  %s1, 6144, %s19, [#allocation4], 128, 128, 8
    $region9: #{tpu_custom_call.1} parent=1 // pred_fallthru
      _
    // Predicated region
    $region10: #{tpu_custom_call.1} parent=1 // pred_check
      _
    $region11: #{tpu_custom_call.1} parent=1 // pred_check_branch
      %26 = sbr.rel (0) target = $region13
    $region12: #{tpu_custom_call.1} parent=1 // pred_region
      _
    $region13: #{tpu_custom_call.1} parent=1 // pred_fallthru
      _
    // Predicated region
    $region14: #{tpu_custom_call.1} parent=1 // pred_check
      _
    $region15: #{tpu_custom_call.1} parent=1 // pred_check_branch
      %28 = sbr.rel (0) target = $region17
    $region16: #{tpu_custom_call.1} parent=1 // pred_region
      %29 = dma.done [#allocation4], 6144
    $region17: #{tpu_custom_call.1} parent=1 // pred_fallthru
      _
    %v30 = vld [vmem:[%s0] sm:$0x7]
    %v31 = vld [vmem:[#allocation3] sm:$0xff]
    %v32 = vld [vmem:[#allocation3 + $0x8] sm:$0xff]
    %v33 = vld [vmem:[#allocation3 + $0x10] sm:$0xff]
    %v34 = vld [vmem:[#allocation3 + $0x18] sm:$0xff]
    %v35 = vld [vmem:[#allocation3 + $0x20] sm:$0xff]
    %v36 = vld [vmem:[#allocation3 + $0x28] sm:$0xff]
    %v37 = vld [vmem:[#allocation3 + $0x30] sm:$0xff]
    %v38 = vld [vmem:[#allocation3 + $0x38] sm:$0xff]
    %v39 = vld [vmem:[#allocation3 + $0x40] sm:$0xff]
    %v40 = vld [vmem:[#allocation3 + $0x48] sm:$0xff]
    %v41 = vld [vmem:[#allocation3 + $0x50] sm:$0xff]
    %v42 = vld [vmem:[#allocation3 + $0x58] sm:$0xff]
    %v43 = vld [vmem:[#allocation3 + $0x60] sm:$0xff]
    %v44 = vld [vmem:[#allocation3 + $0x68] sm:$0xff]
    %v45 = vld [vmem:[#allocation3 + $0x70] sm:$0xff]
    %v46 = vld [vmem:[#allocation3 + $0x78] sm:$0xff]
    %v47 = vld [vmem:[#allocation3 + $0x80] sm:$0xff]
    %v48 = vld [vmem:[#allocation3 + $0x88] sm:$0xff]
    %v49 = vld [vmem:[#allocation3 + $0x90] sm:$0xff]
    %v50 = vld [vmem:[#allocation3 + $0x98] sm:$0xff]
    %v51 = vld [vmem:[#allocation3 + $0xa0] sm:$0xff]
    %v52 = vld [vmem:[#allocation3 + $0xa8] sm:$0xff]
    %v53 = vld [vmem:[#allocation3 + $0xb0] sm:$0xff]
    %v54 = vld [vmem:[#allocation3 + $0xb8] sm:$0xff]
    %v55 = vld [vmem:[#allocation3 + $0xc0] sm:$0xff]
    %v56 = vld [vmem:[#allocation3 + $0xc8] sm:$0xff]
    %v57 = vld [vmem:[#allocation3 + $0xd0] sm:$0xff]
    %v58 = vld [vmem:[#allocation3 + $0xd8] sm:$0xff]
    %v59 = vld [vmem:[#allocation3 + $0xe0] sm:$0xff]
    %v60 = vld [vmem:[#allocation3 + $0xe8] sm:$0xff]
    %v61 = vld [vmem:[#allocation3 + $0xf0] sm:$0xff]
    %v62 = vld [vmem:[#allocation3 + $0xf8] sm:$0xff]
    %v63 = vld [vmem:[#allocation3 + $0x100] sm:$0xff]
    %v64 = vld [vmem:[#allocation3 + $0x108] sm:$0xff]
    %v65 = vld [vmem:[#allocation3 + $0x110] sm:$0xff]
    %v66 = vld [vmem:[#allocation3 + $0x118] sm:$0xff]
    %v67 = vld [vmem:[#allocation3 + $0x120] sm:$0xff]
    %v68 = vld [vmem:[#allocation3 + $0x128] sm:$0xff]
    %v69 = vld [vmem:[#allocation3 + $0x130] sm:$0xff]
    %v70 = vld [vmem:[#allocation3 + $0x138] sm:$0xff]
    %v71 = vld [vmem:[#allocation3 + $0x140] sm:$0xff]
    %v72 = vld [vmem:[#allocation3 + $0x148] sm:$0xff]
    %v73 = vld [vmem:[#allocation3 + $0x150] sm:$0xff]
    %v74 = vld [vmem:[#allocation3 + $0x158] sm:$0xff]
    %v75 = vld [vmem:[#allocation3 + $0x160] sm:$0xff]
    %v76 = vld [vmem:[#allocation3 + $0x168] sm:$0xff]
    %v77 = vld [vmem:[#allocation3 + $0x170] sm:$0xff]
    %v78 = vld [vmem:[#allocation3 + $0x178] sm:$0xff]
    %s79 = sld [smem:[#allocation2]]
    %v80 = vstv %s79
    %v82 = vlaneseq
    %v83 = vshrl.u32 %v82, 7
    %v84 = vsub.s32 0, %v83
    %v85 = vrot.slane %v30, %v84
    %v86 = vlaneseq
    %v87 = vshrl.u32 %v86, 7
    %v88 = vsub.s32 1, %v87
    %v89 = vrot.slane %v30, %v88
    %v90 = vlaneseq
    %v91 = vshrl.u32 %v90, 7
    %v92 = vsub.s32 2, %v91
    %v93 = vrot.slane %v30, %v92
    %97 = vmatprep.subr.mxu0 0.0
    %98 = vmatpush1.msra.mxu0 %v31
    %99 = vmatprep.subr.mxu0 0.0
    %100 = vmatpush1.msra.mxu0 %v32
    %101 = vmatprep.subr.mxu0 0.0
    %102 = vmatpush1.msra.mxu0 %v33
    %103 = vmatprep.subr.mxu0 0.0
    %104 = vmatpush1.msra.mxu0 %v34
    %105 = vmatprep.subr.mxu0 0.0
    %106 = vmatpush1.msra.mxu0 %v35
    %107 = vmatprep.subr.mxu0 0.0
    %108 = vmatpush1.msra.mxu0 %v36
    %109 = vmatprep.subr.mxu0 0.0
    %110 = vmatpush1.msra.mxu0 %v37
    %111 = vmatprep.subr.mxu0 0.0
    %112 = vmatpush1.msra.mxu0 %v38
    %113 = vmatprep.subr.mxu0 0.0
    %114 = vmatpush1.msra.mxu0 %v39
    %115 = vmatprep.subr.mxu0 0.0
    %116 = vmatpush1.msra.mxu0 %v40
    %117 = vmatprep.subr.mxu0 0.0
    %118 = vmatpush1.msra.mxu0 %v41
    %119 = vmatprep.subr.mxu0 0.0
    %120 = vmatpush1.msra.mxu0 %v42
    %121 = vmatprep.subr.mxu0 0.0
    %122 = vmatpush1.msra.mxu0 %v43
    %123 = vmatprep.subr.mxu0 0.0
    %124 = vmatpush1.msra.mxu0 %v44
    %125 = vmatprep.subr.mxu0 0.0
    %126 = vmatpush1.msra.mxu0 %v45
    %127 = vmatprep.subr.mxu0 0.0
    %128 = vmatpush1.msra.mxu0 %v46
    %129 = vmatprep.subr.mxu0 0.0
    %130 = vmatpush1.msra.mxu0 %v47
    %131 = vmatprep.subr.mxu0 0.0
    %132 = vmatpush1.msra.mxu0 %v48
    %133 = vmatprep.subr.mxu0 0.0
    %134 = vmatpush1.msra.mxu0 %v49
    %135 = vmatprep.subr.mxu0 0.0
    %136 = vmatpush1.msra.mxu0 %v50
    %137 = vmatprep.subr.mxu0 0.0
    %138 = vmatpush1.msra.mxu0 %v51
    %139 = vmatprep.subr.mxu0 0.0
    %140 = vmatpush1.msra.mxu0 %v52
    %141 = vmatprep.subr.mxu0 0.0
    %142 = vmatpush1.msra.mxu0 %v53
    %143 = vmatprep.subr.mxu0 0.0
    %144 = vmatpush1.msra.mxu0 %v54
    %145 = vmatprep.subr.mxu0 0.0
    %146 = vmatpush1.msra.mxu0 %v55
    %147 = vmatprep.subr.mxu0 0.0
    %148 = vmatpush1.msra.mxu0 %v56
    %149 = vmatprep.subr.mxu0 0.0
    %150 = vmatpush1.msra.mxu0 %v57
    %151 = vmatprep.subr.mxu0 0.0
    %152 = vmatpush1.msra.mxu0 %v58
    %153 = vmatprep.subr.mxu0 0.0
    %154 = vmatpush1.msra.mxu0 %v59
    %155 = vmatprep.subr.mxu0 0.0
    %156 = vmatpush1.msra.mxu0 %v60
    %157 = vmatprep.subr.mxu0 0.0
    %158 = vmatpush1.msra.mxu0 %v61
    %159 = vmatprep.subr.mxu0 0.0
    %160 = vmatpush1.msra.mxu0 %v62
    %161 = vmatprep.mubr.f32.mxu0 %v89
    %162 = vmatmul.mubr.f32.gmra.mrb[0].mxu0 %v85
    %v163 = vpop.f32.mrb[0].mxu0
    %v164 = vadd.f32 %v80, %v163
    %v165 = vpop.f32.mrb[0].mxu0
    %166 = vdwg.mxu0
    %167 = vmatprep.subr.mxu0 0.0
    %168 = vmatpush1.msra.mxu0 %v63
    %169 = vmatprep.subr.mxu0 0.0
    %170 = vmatpush1.msra.mxu0 %v64
    %171 = vmatprep.subr.mxu0 0.0
    %172 = vmatpush1.msra.mxu0 %v65
    %173 = vmatprep.subr.mxu0 0.0
    %174 = vmatpush1.msra.mxu0 %v66
    %175 = vmatprep.subr.mxu0 0.0
    %176 = vmatpush1.msra.mxu0 %v67
    %177 = vmatprep.subr.mxu0 0.0
    %178 = vmatpush1.msra.mxu0 %v68
    %179 = vmatprep.subr.mxu0 0.0
    %180 = vmatpush1.msra.mxu0 %v69
    %181 = vmatprep.subr.mxu0 0.0
    %182 = vmatpush1.msra.mxu0 %v70
    %183 = vmatprep.subr.mxu0 0.0
    %184 = vmatpush1.msra.mxu0 %v71
    %185 = vmatprep.subr.mxu0 0.0
    %186 = vmatpush1.msra.mxu0 %v72
    %187 = vmatprep.subr.mxu0 0.0
    %188 = vmatpush1.msra.mxu0 %v73
    %189 = vmatprep.subr.mxu0 0.0
    %190 = vmatpush1.msra.mxu0 %v74
    %191 = vmatprep.subr.mxu0 0.0
    %192 = vmatpush1.msra.mxu0 %v75
    %193 = vmatprep.subr.mxu0 0.0
    %194 = vmatpush1.msra.mxu0 %v76
    %195 = vmatprep.subr.mxu0 0.0
    %196 = vmatpush1.msra.mxu0 %v77
    %197 = vmatprep.subr.mxu0 0.0
    %198 = vmatpush1.msra.mxu0 %v78
    %199 = vmatprep.subr.mxu0 0.0
    %200 = vmatpush1.msra.mxu0 0.0
    %201 = vmatprep.subr.mxu0 0.0
    %202 = vmatpush1.msra.mxu0 0.0
    %203 = vmatprep.subr.mxu0 0.0
    %204 = vmatpush1.msra.mxu0 0.0
    %205 = vmatprep.subr.mxu0 0.0
    %206 = vmatpush1.msra.mxu0 0.0
    %207 = vmatprep.subr.mxu0 0.0
    %208 = vmatpush1.msra.mxu0 0.0
    %209 = vmatprep.subr.mxu0 0.0
    %210 = vmatpush1.msra.mxu0 0.0
    %211 = vmatprep.subr.mxu0 0.0
    %212 = vmatpush1.msra.mxu0 0.0
    %213 = vmatprep.subr.mxu0 0.0
    %214 = vmatpush1.msra.mxu0 0.0
    %215 = vmatprep.subr.mxu0 0.0
    %216 = vmatpush1.msra.mxu0 0.0
    %217 = vmatprep.subr.mxu0 0.0
    %218 = vmatpush1.msra.mxu0 0.0
    %219 = vmatprep.subr.mxu0 0.0
    %220 = vmatpush1.msra.mxu0 0.0
    %221 = vmatprep.subr.mxu0 0.0
    %222 = vmatpush1.msra.mxu0 0.0
    %223 = vmatprep.subr.mxu0 0.0
    %224 = vmatpush1.msra.mxu0 0.0
    %225 = vmatprep.subr.mxu0 0.0
    %226 = vmatpush1.msra.mxu0 0.0
    %227 = vmatprep.subr.mxu0 0.0
    %228 = vmatpush1.msra.mxu0 0.0
    %229 = vmatprep.subr.mxu0 0.0
    %230 = vmatpush1.msra.mxu0 0.0
    %231 = vmatprep.mubr.f32.mxu0 0.0
    %232 = vmatmul.mubr.f32.gmra.mrb[0].mxu0 %v93
    %v233 = vpop.f32.mrb[0].mxu0
    %v234 = vadd.f32 %v164, %v233
    %v235 = vpop.f32.mrb[0].mxu0
    %236 = vdwg.mxu0
    %237 = vst [vmem:[#allocation6] sm:$0x1] %v234
    // Predicated region
    $region18: #{tpu_custom_call.1} parent=1 // pred_check
      _
    $region19: #{tpu_custom_call.1} parent=1 // pred_check_branch
      %239 = sbr.rel (0) target = $region21
    $region20: #{tpu_custom_call.1} parent=1 // pred_region
      %s241 = ssub.s32 16, 16
      %242 = vsyncadd [#allocation5], %s241
      %s244 = sshll.u32 [#allocation6], 4
      %s245 = int_to_ptr.vmem [resolvable:$true] %s244
      %247 = dma.vmem_to_hbm [thread:$0]  %s245, 16, %s3, [#allocation5]
    $region21: #{tpu_custom_call.1} parent=1 // pred_fallthru
      _
    // Predicated region
    $region22: #{tpu_custom_call.1} parent=1 // pred_check
      _
    $region23: #{tpu_custom_call.1} parent=1 // pred_check_branch
      %249 = sbr.rel (0) target = $region25
    $region24: #{tpu_custom_call.1} parent=1 // pred_region
      %250 = dma.done [#allocation5], 16
    $region25: #{tpu_custom_call.1} parent=1 // pred_fallthru
      _
    %251 = vsyncpa [#allocation4], 1
    %252 = vsyncpa [#allocation5], 1

</llo_original>
